<compile_context>
chip_gen: v7x
topology: tpu7x:2x2x1
jax: 0.10.0
libtpu: 0.0.40
codegen_flags: <defaults>
</compile_context>

<pallas_src>
import math

import jax
import jax.numpy as jnp
from jax import lax
from jax.experimental import pallas as pl
from jax.experimental.pallas import tpu as pltpu


_OUT_TILE_BUDGET = 4 << 20      # per-buffer output-tile bytes
_ONEHOT_BUDGET = 4 << 20        # f32 one-hot bytes per grid step
_TABLE_CHUNK_BUDGET = 4 << 20   # per-buffer table-chunk bytes


def _round_up(x, m):
    return ((x + m - 1) // m) * m


def _choose_token_tile(n, e, itemsize, max_tile_n):
    """Tile along the flattened token axis (rows of the output)."""
    cap = (_OUT_TILE_BUDGET // max(e * itemsize, 1)) // 128 * 128
    cap = max(128, min(cap, max(128, (max_tile_n // 128) * 128)))
    if n <= cap and n < 2048:
        # Single full block: block dims == array dims, no (8,128) constraint.
        return n, 1
    # At least two tiles once N is non-trivial so both v7x TensorCores get work.
    tile = min(cap, _round_up(pl.cdiv(n, 2), 128))
    # Prefer an exact divisor (multiple of 128) near the target so the common
    # case has no partial tail tile; never shrink the tile by more than ~25%.
    lo = max(128, tile - 8 * 128, (3 * tile) // 4)
    for cand in range(tile, lo - 1, -128):
        if n % cand == 0:
            tile = cand
            break
    return tile, pl.cdiv(n, tile)


def _choose_vocab_chunk(v, tile_n, e, itemsize):
    """Vocab chunk: bounds the one-hot and the streamed table chunk in VMEM."""
    max_v = min(_ONEHOT_BUDGET // max(tile_n * 4, 1),
                _TABLE_CHUNK_BUDGET // max(e * itemsize, 1))
    max_v = max(8, (max_v // 8) * 8)
    if v <= max_v:
        return v, 1
    chunk = max_v
    lo = max(8, chunk - 8 * 8, (3 * chunk) // 4)
    for cand in range(chunk, lo - 1, -8):
        if v % cand == 0:
            chunk = cand
            break
    return chunk, pl.cdiv(v, chunk)


def _make_kernel(v_total, mask_table_tail):
    def kernel(idx_ref, table_ref, out_ref):
        # idx_ref  : (1, TILE_N)   int32  lane-dense indices (constant over axis 1)
        # table_ref: (V_CHUNK, E)  table chunk for vocab step j
        # out_ref  : (TILE_N, E)   output tile, revisited across the vocab axis
        j = pl.program_id(1)
        v_chunk = table_ref.shape[0]
        tile_n = idx_ref.shape[-1]

        idx = idx_ref[...]                                        # (1, TILE_N)
        base = j * v_chunk
        row_ids = base + lax.broadcasted_iota(jnp.int32, (v_chunk, tile_n), 0)
        one_hot = (idx == row_ids).astype(table_ref.dtype)        # (V_CHUNK, TILE_N)

        tbl = table_ref[...]
        if mask_table_tail:
            # The last vocab chunk may extend past V: its out-of-bounds rows hold
            # unspecified data, so zero them (0 * NaN must not leak into the sum).
            row_valid = (base + lax.broadcasted_iota(jnp.int32, (v_chunk, 1), 0)) < v_total
            tbl = jnp.where(row_valid, tbl, jnp.zeros_like(tbl))

        # out[n, e] (+)= sum_v one_hot[v, n] * tbl[v, e]  (transposed-LHS MXU matmul)
        # TODO(synk): verify with pl.lower_as_mlir that Mosaic emits this without an
        # XLU transpose of the one-hot (perf-only concern; result is correct anyway).
        contrib = lax.dot_general(
            one_hot, tbl,
            dimension_numbers=(((0,), (0,)), ((), ())),
            precision=lax.Precision.HIGHEST,
            preferred_element_type=jnp.float32,
        ).astype(out_ref.dtype)

        @pl.when(j == 0)
        def _init():
            out_ref[...] = contrib

        @pl.when(j > 0)
        def _accum():
            # Exact: every output element gets exactly one nonzero contribution;
            # all other vocab-chunk contributions are exact zeros.
            out_ref[...] += contrib

    return kernel


def channel_embedding_discrete(channel_seq, table, *, max_tile_n=8192):
    """Pallas TPU equivalent of ChannelEmbeddingDiscrete.forward.

    channel_seq: integer array of any shape; table: [V, E] -> output [..., E].
    NOTE: out-of-range indices yield an all-zero row (PyTorch would raise).
    """
    V, E = table.shape
    lead = channel_seq.shape
    N = int(math.prod(lead)) if lead else 1
    itemsize = jnp.dtype(table.dtype).itemsize

    idx = channel_seq.reshape(1, N).astype(jnp.int32)   # lane-dense index stream

    tile_n, num_tiles = _choose_token_tile(N, E, itemsize, max_tile_n)
    v_chunk, num_vchunks = _choose_vocab_chunk(V, tile_n, E, itemsize)
    mask_table_tail = (V % v_chunk) != 0

    vmem_need = (
        2 * tile_n * E * itemsize        # output tile (double-buffered)
        + 2 * v_chunk * E * itemsize     # table chunk (double-buffered)
        + 2 * tile_n * 4                 # index tile
        + v_chunk * tile_n * 4           # one-hot intermediate
        + tile_n * E * 4                 # f32 matmul result before cast
        + (6 << 20)                      # headroom / internal scratch
    )
    try:
        phys_vmem = int(pltpu.get_tpu_info().vmem_capacity_bytes)
    except Exception:
        phys_vmem = 64 << 20             # conservative fallback (v7x physical)
    vmem_limit = int(min(max(vmem_need, 32 << 20), int(phys_vmem * 0.8)))

    out = pl.pallas_call(
        _make_kernel(V, mask_table_tail),
        out_shape=jax.ShapeDtypeStruct((N, E), table.dtype),
        grid_spec=pltpu.PrefetchScalarGridSpec(
            num_scalar_prefetch=0,
            grid=(num_tiles, num_vchunks),        # vocab (reduction) axis last
            in_specs=[
                # Lane-dense index tile; block index constant across the vocab axis.
                pl.BlockSpec((1, tile_n), lambda i, j: (0, i)),
                # Streamed table chunk.  (pipeline_mode=pl.Buffered(1) would halve
                # its VMEM when num_vchunks == 1; skipped - negligible at small V.)
                pl.BlockSpec((v_chunk, E), lambda i, j: (j, 0)),
            ],
            out_specs=pl.BlockSpec((tile_n, E), lambda i, j: (i, 0)),
        ),
        compiler_params=pltpu.CompilerParams(
            dimension_semantics=("parallel", "arbitrary"),
            vmem_limit_bytes=vmem_limit,
        ),
        cost_estimate=pl.CostEstimate(
            flops=2 * N * V * E,                  # one-hot matmul
            transcendentals=0,
            bytes_accessed=N * E * itemsize + N * 4 + V * E * itemsize,
        ),
    )(idx, table)

    return out.reshape(*lead, E)


if __name__ == "__main__":
    # Module config: nn.Embedding(num_embeddings, embedding_dim=embedding_size)
    num_embeddings = 16
    embedding_size = 128   # module default

    key = jax.random.PRNGKey(0)
    k_tab, k_idx, k_idx2 = jax.random.split(key, 3)

    # Deterministic parameter init (nn.Embedding default: N(0, 1)).
    table = jax.random.normal(k_tab, (num_embeddings, embedding_size), jnp.float32)

    # Small example input consistent with forward(channel_seq): int indices [B, S].
    B, S = 2, 8
    channel_seq = jax.random.randint(k_idx, (B, S), 0, num_embeddings, jnp.int32)

    out = channel_embedding_discrete(channel_seq, table)
    out = jax.block_until_ready(out)
    ref = table[channel_seq]
    assert out.shape == (B, S, embedding_size)
    # Tolerance accommodates MXU f32 precision modes (values are exact gathers up
    # to the matmul pass precision; indexing bugs would show O(1) errors).
    assert jnp.allclose(out, ref, atol=2e-2, rtol=2e-2), "mismatch vs reference (small)"

    # Second check: exercises the multi-tile (megacore) path and the masked
    # partial tail tile (N = 2080 is not a multiple of the chosen 1152-row tile).
    B2, S2 = 16, 130
    channel_seq2 = jax.random.randint(k_idx2, (B2, S2), 0, num_embeddings, jnp.int32)
    out2 = jax.block_until_ready(channel_embedding_discrete(channel_seq2, table))
    ref2 = table[channel_seq2]
    assert out2.shape == (B2, S2, embedding_size)
    assert jnp.allclose(out2, ref2, atol=2e-2, rtol=2e-2), "mismatch vs reference (tiled)"

    print("KERNEL_OK")
</pallas_src>

<mosaic_0001>
module attributes {stable_mosaic.version = 11 : i64} {
  func.func @kernel(%arg0: i32, %arg1: i32, %arg2: memref<1x16xi32, #tpu.memory_space<vmem>>, %arg3: memref<16x128xf32, #tpu.memory_space<vmem>>, %arg4: memref<16x128xf32, #tpu.memory_space<vmem>>) attributes {dimension_semantics = [#tpu.dimension_semantics<parallel>, #tpu.dimension_semantics<arbitrary>], iteration_bounds = array<i64: 1, 1>, scalar_prefetch = 0 : i64, scratch_operands = 0 : i64, tpu.core_type = #tpu.core_type<tc>, window_params = [{transform_indices = @transform_0, window_bounds = array<i64: 1, 16>}, {transform_indices = @transform_1, window_bounds = array<i64: 16, 128>}, {transform_indices = @transform_2, window_bounds = array<i64: 16, 128>}]} {
    %c0 = arith.constant 0 : index
    %c0_0 = arith.constant 0 : index
    %0 = vector.load %arg2[%c0, %c0_0] : memref<1x16xi32, #tpu.memory_space<vmem>>, vector<1x16xi32>
    %c16_i32 = arith.constant 16 : i32
    %1 = arith.muli %arg1, %c16_i32 : i32
    %2 = tpu.iota {dimensions = array<i32: 0>} : vector<16x16xi32>
    %3 = vector.broadcast %1 : i32 to vector<16x16xi32>
    %4 = arith.addi %3, %2 : vector<16x16xi32>
    %5 = vector.broadcast %0 : vector<1x16xi32> to vector<16x16xi32>
    %6 = arith.cmpi eq, %5, %4 : vector<16x16xi32>
    %7 = arith.extui %6 : vector<16x16xi1> to vector<16x16xi32>
    %8 = arith.sitofp %7 : vector<16x16xi32> to vector<16x16xf32>
    %c0_1 = arith.constant 0 : index
    %c0_2 = arith.constant 0 : index
    %9 = vector.load %arg3[%c0_1, %c0_2] : memref<16x128xf32, #tpu.memory_space<vmem>>, vector<16x128xf32>
    %cst = arith.constant dense<0.000000e+00> : vector<16x128xf32>
    %10 = tpu.matmul %8, %9, %cst {dimension_numbers = #tpu.dot_dimension_numbers<[0], [0], [1], [1], [0, 1, 1, 1], [], []>, precision = #tpu.contract_precision<fp32>} : vector<16x16xf32>, vector<16x128xf32>, vector<16x128xf32> -> vector<16x128xf32>
    %c0_i32 = arith.constant 0 : i32
    %11 = arith.cmpi eq, %arg1, %c0_i32 : i32
    %12 = arith.extui %11 : i1 to i32
    %c0_i32_3 = arith.constant 0 : i32
    %13 = arith.cmpi ne, %12, %c0_i32_3 : i32
    scf.if %13 {
      %c0_6 = arith.constant 0 : index
      %c0_7 = arith.constant 0 : index
      %17 = vector.load %arg4[%c0_6, %c0_7] : memref<16x128xf32, #tpu.memory_space<vmem>>, vector<16x128xf32>
      tpu.vector_store %arg4[%c0_6, %c0_7], %10 {strides = array<i32>} : memref<16x128xf32, #tpu.memory_space<vmem>>, vector<16x128xf32>,
    } else {
    }
    %c0_i32_4 = arith.constant 0 : i32
    %14 = arith.cmpi sgt, %arg1, %c0_i32_4 : i32
    %15 = arith.extui %14 : i1 to i32
    %c0_i32_5 = arith.constant 0 : i32
    %16 = arith.cmpi ne, %15, %c0_i32_5 : i32
    scf.if %16 {
      %c0_6 = arith.constant 0 : index
      %c0_7 = arith.constant 0 : index
      %17 = vector.load %arg4[%c0_6, %c0_7] : memref<16x128xf32, #tpu.memory_space<vmem>>, vector<16x128xf32>
      %18 = arith.addf %17, %10 : vector<16x128xf32>
      %c0_8 = arith.constant 0 : index
      %c0_9 = arith.constant 0 : index
      %19 = vector.load %arg4[%c0_8, %c0_9] : memref<16x128xf32, #tpu.memory_space<vmem>>, vector<16x128xf32>
      tpu.vector_store %arg4[%c0_8, %c0_9], %18 {strides = array<i32>} : memref<16x128xf32, #tpu.memory_space<vmem>>, vector<16x128xf32>,
    } else {
    }
    return
  }
  func.func @transform_0(%arg0: i32, %arg1: i32) -> (i32, i32) {
    %c0_i32 = arith.constant 0 : i32
    %c0_i32_0 = arith.constant 0 : i32
    return %c0_i32, %arg0 : i32, i32
  }
  func.func @transform_1(%arg0: i32, %arg1: i32) -> (i32, i32) {
    %c0_i32 = arith.constant 0 : i32
    %c0_i32_0 = arith.constant 0 : i32
    return %arg1, %c0_i32 : i32, i32
  }
  func.func @transform_2(%arg0: i32, %arg1: i32) -> (i32, i32) {
    %c0_i32 = arith.constant 0 : i32
    %c0_i32_0 = arith.constant 0 : i32
    return %arg0, %c0_i32 : i32, i32
  }
}

</mosaic_0001>

<llo_original>
// kernel: tpu_custom_call.1
$region0: #{tpu_custom_call.1}
  #allocation0 [shape = 'u32[]', space=smem, size = 0x4, offset = 0x4, fixed_abs, tag = 'smem constant byte address 0x4 - core index']
  #allocation1 [shape = 'u32[144,128]{1,0:T(1,128)}', space=vmem, size = 0x12000, scoped, tag = 'internal scratch']
  %s0 = inlined_call_operand.hbm [shape: s32[1,16], index: 0, kind: input, shape index: {}]
  %s1 = inlined_call_operand.hbm [shape: f32[16,128], index: 1, kind: input, shape index: {}]
  %s2 = inlined_call_operand.hbm [shape: f32[16,128], index: 2, kind: output, shape index: {}]
  %s3 = sld [smem:[#allocation0]]
  $region34: #{tpu_custom_call.1} parent=0
    _
  %s5 = ssub.s32 1, %s3
  %s6 = scalar_select 0, %s5, %s3
  $region1: #{tpu_custom_call.1} parent=0
    #allocation2 [shape = 'u8[512]{0}', space=vmem, size = 0x400, scoped, tag = 'input window, operand 0, single buffered']
    #allocation3 [shape = 's32[1]{0}', space=sflag, size = 0x4, scoped, tag = 'scoped memory for tpu_custom_call.1']
    #allocation4 [shape = 's32[1]{0}', space=sflag, size = 0x4, scoped, tag = 'scoped memory for tpu_custom_call.1']
    #allocation5 [shape = 'u8[8192]{0}', space=vmem, size = 0x2000, scoped, tag = 'input window, operand 1, single buffered']
    #allocation6 [shape = 's32[1]{0}', space=sflag, size = 0x4, scoped, tag = 'scoped memory for tpu_custom_call.1']
    #allocation7 [shape = 'u8[8192]{0}', space=vmem, size = 0x2000, scoped, tag = 'output window, operand 0, single buffered']
    %7 = vsyncpa [#allocation3], 0
    %8 = vsyncpa [#allocation6], 0
    %9 = vsyncpa [#allocation4], 0
    // Predicated region
    $region2: #{tpu_custom_call.1} parent=1 // pred_check
      _
    $region3: #{tpu_custom_call.1} parent=1 // pred_check_branch
      %11 = sbr.rel (0) target = $region5
    $region4: #{tpu_custom_call.1} parent=1 // pred_region
      %s13 = ssub.s32 16, 16
      %14 = vsyncadd [#allocation3], %s13
      %s16 = sshll.u32 [#allocation2], 4
      %s17 = int_to_ptr.vmem [resolvable:$true] %s16
      %19 = dma.hbm_to_vmem [thread:$0]  %s0, 16, %s17, [#allocation3]
    $region5: #{tpu_custom_call.1} parent=1 // pred_fallthru
      _
    // Predicated region
    $region6: #{tpu_custom_call.1} parent=1 // pred_check
      _
    $region7: #{tpu_custom_call.1} parent=1 // pred_check_branch
      %21 = sbr.rel (0) target = $region9
    $region8: #{tpu_custom_call.1} parent=1 // pred_region
      %s23 = ssub.s32 256, 256
      %24 = vsyncadd [#allocation6], %s23
      %s25 = sshll.u32 [#allocation5], 4
      %s26 = int_to_ptr.vmem [resolvable:$true] %s25
      %31 = dma.hbm_to_vmem [thread:$0]  %s1, 256, %s26, [#allocation6], 128, 128, 8
    $region9: #{tpu_custom_call.1} parent=1 // pred_fallthru
      _
    // Predicated region
    $region10: #{tpu_custom_call.1} parent=1 // pred_check
      _
    $region11: #{tpu_custom_call.1} parent=1 // pred_check_branch
      %33 = sbr.rel (0) target = $region13
    $region12: #{tpu_custom_call.1} parent=1 // pred_region
      %34 = dma.done [#allocation3], 16
    $region13: #{tpu_custom_call.1} parent=1 // pred_fallthru
      _
    // Predicated region
    $region14: #{tpu_custom_call.1} parent=1 // pred_check
      _
    $region15: #{tpu_custom_call.1} parent=1 // pred_check_branch
      %36 = sbr.rel (0) target = $region17
    $region16: #{tpu_custom_call.1} parent=1 // pred_region
      %37 = dma.done [#allocation6], 256
    $region17: #{tpu_custom_call.1} parent=1 // pred_fallthru
      _
    %v38 = vld [vmem:[#allocation2] sm:$0x1]
    %s39 = smul.u32 0, 16
    %v40 = vlaneseq
    %v41 = vshrl.u32 %v40, 7
    %v42 = vadd.s32 %v41, 8
    %v43 = vstv %s39
    %v44 = vadd.s32 %v43, %v41
    %v45 = vadd.s32 %v43, %v42
    %v46 = vlaneseq
    %v47 = vshrl.u32 %v46, 7
    %v48 = vsub.s32 0, %v47
    %v49 = vrot.slane %v38, %v48
    %vm50 = vcmp.eq.s32.totalorder %v49, %v44
    %vm51 = vcmp.eq.s32.totalorder %v49, %v45
    %v52 = vsel %vm50, 1, 0
    %v53 = vsel %vm51, 1, 0
    %v54 = vcvt.s32.f32 %v52
    %v55 = vcvt.s32.f32 %v53
    %v56 = vld [vmem:[#allocation5] sm:$0xff]
    %v57 = vld [vmem:[#allocation5 + $0x8] sm:$0xff]
    %58 = vxpose.xlu0.b32.start [1/16] %v54, 128
    %59 = vxpose.xlu0.b32.cont [2/16] %v55, 128
    %60 = vxpose.xlu0.b32.cont [3/16] 0.0, 128
    %61 = vxpose.xlu0.b32.cont [4/16] 0.0, 128
    %62 = vxpose.xlu0.b32.cont [5/16] 0.0, 128
    %63 = vxpose.xlu0.b32.cont [6/16] 0.0, 128
    %64 = vxpose.xlu0.b32.cont [7/16] 0.0, 128
    %65 = vxpose.xlu0.b32.cont [8/16] 0.0, 128
    %66 = vxpose.xlu0.b32.cont [9/16] 0.0, 128
    %67 = vxpose.xlu0.b32.cont [10/16] 0.0, 128
    %68 = vxpose.xlu0.b32.cont [11/16] 0.0, 128
    %69 = vxpose.xlu0.b32.cont [12/16] 0.0, 128
    %70 = vxpose.xlu0.b32.cont [13/16] 0.0, 128
    %71 = vxpose.xlu0.b32.cont [14/16] 0.0, 128
    %72 = vxpose.xlu0.b32.cont [15/16] 0.0, 128
    %73 = vxpose.xlu0.b32.end [16/16] 0.0, 128
    %v74 = vpop.trf.xlu0
    %v75 = vpop.trf.xlu0
    %v76 = vpop.trf.xlu0
    %v77 = vpop.trf.xlu0
    %v78 = vpop.trf.xlu0
    %v79 = vpop.trf.xlu0
    %v80 = vpop.trf.xlu0
    %v81 = vpop.trf.xlu0
    %v82 = vpop.trf.xlu0
    %v83 = vpop.trf.xlu0
    %v84 = vpop.trf.xlu0
    %v85 = vpop.trf.xlu0
    %v86 = vpop.trf.xlu0
    %v87 = vpop.trf.xlu0
    %v88 = vpop.trf.xlu0
    %v89 = vpop.trf.xlu0
    %vm90 = vcmask 130048
    %v92 = vsel %vm90, %v74, 0
    %v95 = vsel %vm90, %v75, 0
    %97 = vmatprep.subr.mxu0 0.0
    %v98 = vand.u32 %v56, 4294901760
    %99 = vmatpush1.msra.mxu0 %v98
    %100 = vmatprep.subr.mxu0 0.0
    %v101 = vand.u32 %v57, 4294901760
    %102 = vmatpush1.msra.mxu0 %v101
    %103 = vmatprep.subr.mxu0 0.0
    %104 = vmatpush1.msra.mxu0 0.0
    %105 = vmatprep.subr.mxu0 0.0
    %106 = vmatpush1.msra.mxu0 0.0
    %107 = vmatprep.subr.mxu0 0.0
    %108 = vmatpush1.msra.mxu0 0.0
    %109 = vmatprep.subr.mxu0 0.0
    %110 = vmatpush1.msra.mxu0 0.0
    %111 = vmatprep.subr.mxu0 0.0
    %112 = vmatpush1.msra.mxu0 0.0
    %113 = vmatprep.subr.mxu0 0.0
    %114 = vmatpush1.msra.mxu0 0.0
    %115 = vmatprep.subr.mxu0 0.0
    %116 = vmatpush1.msra.mxu0 0.0
    %117 = vmatprep.subr.mxu0 0.0
    %118 = vmatpush1.msra.mxu0 0.0
    %119 = vmatprep.subr.mxu0 0.0
    %120 = vmatpush1.msra.mxu0 0.0
    %121 = vmatprep.subr.mxu0 0.0
    %122 = vmatpush1.msra.mxu0 0.0
    %123 = vmatprep.subr.mxu0 0.0
    %124 = vmatpush1.msra.mxu0 0.0
    %125 = vmatprep.subr.mxu0 0.0
    %126 = vmatpush1.msra.mxu0 0.0
    %127 = vmatprep.subr.mxu0 0.0
    %128 = vmatpush1.msra.mxu0 0.0
    %129 = vmatprep.subr.mxu0 0.0
    %130 = vmatpush1.msra.mxu0 0.0
    %131 = vmatprep.subr.mxu0 0.0
    %132 = vmatpush1.msra.mxu0 0.0
    %133 = vmatprep.subr.mxu0 0.0
    %134 = vmatpush1.msra.mxu0 0.0
    %135 = vmatprep.subr.mxu0 0.0
    %136 = vmatpush1.msra.mxu0 0.0
    %137 = vmatprep.subr.mxu0 0.0
    %138 = vmatpush1.msra.mxu0 0.0
    %139 = vmatprep.subr.mxu0 0.0
    %140 = vmatpush1.msra.mxu0 0.0
    %141 = vmatprep.subr.mxu0 0.0
    %142 = vmatpush1.msra.mxu0 0.0
    %143 = vmatprep.subr.mxu0 0.0
    %144 = vmatpush1.msra.mxu0 0.0
    %145 = vmatprep.subr.mxu0 0.0
    %146 = vmatpush1.msra.mxu0 0.0
    %147 = vmatprep.subr.mxu0 0.0
    %148 = vmatpush1.msra.mxu0 0.0
    %149 = vmatprep.subr.mxu0 0.0
    %150 = vmatpush1.msra.mxu0 0.0
    %151 = vmatprep.subr.mxu0 0.0
    %152 = vmatpush1.msra.mxu0 0.0
    %153 = vmatprep.subr.mxu0 0.0
    %154 = vmatpush1.msra.mxu0 0.0
    %155 = vmatprep.subr.mxu0 0.0
    %156 = vmatpush1.msra.mxu0 0.0
    %157 = vmatprep.subr.mxu0 0.0
    %158 = vmatpush1.msra.mxu0 0.0
    %159 = vmatprep.subr.mxu0 0.0
    %160 = vmatpush1.msra.mxu0 0.0
    %161 = vmatprep.subr.mxu0 0.0
    %162 = vmatpush1.msra.mxu0 0.0
    %163 = vmatprep.mubr.f32.mxu0 0.0
    %v164 = vand.u32 %v92, 4294901760
    %v165 = vsub.f32 %v92, %v164
    %v166 = vand.u32 %v165, 4294901760
    %v167 = vsub.f32 %v165, %v166
    %v168 = vand.u32 %v167, 4294901760
    %169 = vmatmul.mubr.f32.gmra.mrb[0].mxu0 %v168
    %v170 = vpop.f32.mrb[0].mxu0
    %v171 = vadd.f32 0.0, %v170
    %v172 = vpop.f32.mrb[0].mxu0
    %173 = vmatprep.mubr.f32.mxu0 0.0
    %v174 = vand.u32 %v95, 4294901760
    %v175 = vsub.f32 %v95, %v174
    %v176 = vand.u32 %v175, 4294901760
    %v177 = vsub.f32 %v175, %v176
    %v178 = vand.u32 %v177, 4294901760
    %179 = vmatmul.mubr.f32.gmra.mrb[0].mxu0 %v178
    %v180 = vpop.f32.mrb[0].mxu0
    %v181 = vadd.f32 0.0, %v180
    %v182 = vpop.f32.mrb[0].mxu0
    %183 = vdwg.mxu0
    %184 = vmatprep.subr.mxu0 0.0
    %v185 = vand.u32 %v56, 4294901760
    %v186 = vsub.f32 %v56, %v185
    %v187 = vand.u32 %v186, 4294901760
    %v188 = vsub.f32 %v186, %v187
    %v189 = vand.u32 %v188, 4294901760
    %190 = vmatpush1.msra.mxu0 %v189
    %191 = vmatprep.subr.mxu0 0.0
    %v192 = vand.u32 %v57, 4294901760
    %v193 = vsub.f32 %v57, %v192
    %v194 = vand.u32 %v193, 4294901760
    %v195 = vsub.f32 %v193, %v194
    %v196 = vand.u32 %v195, 4294901760
    %197 = vmatpush1.msra.mxu0 %v196
    %198 = vmatprep.subr.mxu0 0.0
    %199 = vmatpush1.msra.mxu0 0.0
    %200 = vmatprep.subr.mxu0 0.0
    %201 = vmatpush1.msra.mxu0 0.0
    %202 = vmatprep.subr.mxu0 0.0
    %203 = vmatpush1.msra.mxu0 0.0
    %204 = vmatprep.subr.mxu0 0.0
    %205 = vmatpush1.msra.mxu0 0.0
    %206 = vmatprep.subr.mxu0 0.0
    %207 = vmatpush1.msra.mxu0 0.0
    %208 = vmatprep.subr.mxu0 0.0
    %209 = vmatpush1.msra.mxu0 0.0
    %210 = vmatprep.subr.mxu0 0.0
    %211 = vmatpush1.msra.mxu0 0.0
    %212 = vmatprep.subr.mxu0 0.0
    %213 = vmatpush1.msra.mxu0 0.0
    %214 = vmatprep.subr.mxu0 0.0
    %215 = vmatpush1.msra.mxu0 0.0
    %216 = vmatprep.subr.mxu0 0.0
    %217 = vmatpush1.msra.mxu0 0.0
    %218 = vmatprep.subr.mxu0 0.0
    %219 = vmatpush1.msra.mxu0 0.0
    %220 = vmatprep.subr.mxu0 0.0
    %221 = vmatpush1.msra.mxu0 0.0
    %222 = vmatprep.subr.mxu0 0.0
    %223 = vmatpush1.msra.mxu0 0.0
    %224 = vmatprep.subr.mxu0 0.0
    %225 = vmatpush1.msra.mxu0 0.0
    %226 = vmatprep.subr.mxu0 0.0
    %227 = vmatpush1.msra.mxu0 0.0
    %228 = vmatprep.subr.mxu0 0.0
    %229 = vmatpush1.msra.mxu0 0.0
    %230 = vmatprep.subr.mxu0 0.0
    %231 = vmatpush1.msra.mxu0 0.0
    %232 = vmatprep.subr.mxu0 0.0
    %233 = vmatpush1.msra.mxu0 0.0
    %234 = vmatprep.subr.mxu0 0.0
    %235 = vmatpush1.msra.mxu0 0.0
    %236 = vmatprep.subr.mxu0 0.0
    %237 = vmatpush1.msra.mxu0 0.0
    %238 = vmatprep.subr.mxu0 0.0
    %239 = vmatpush1.msra.mxu0 0.0
    %240 = vmatprep.subr.mxu0 0.0
    %241 = vmatpush1.msra.mxu0 0.0
    %242 = vmatprep.subr.mxu0 0.0
    %243 = vmatpush1.msra.mxu0 0.0
    %244 = vmatprep.subr.mxu0 0.0
    %245 = vmatpush1.msra.mxu0 0.0
    %246 = vmatprep.subr.mxu0 0.0
    %247 = vmatpush1.msra.mxu0 0.0
    %248 = vmatprep.subr.mxu0 0.0
    %249 = vmatpush1.msra.mxu0 0.0
    %250 = vmatprep.subr.mxu0 0.0
    %251 = vmatpush1.msra.mxu0 0.0
    %252 = vmatprep.subr.mxu0 0.0
    %253 = vmatpush1.msra.mxu0 0.0
    %254 = vmatprep.subr.mxu0 0.0
    %255 = vmatpush1.msra.mxu0 0.0
    %256 = vmatprep.subr.mxu0 0.0
    %257 = vmatpush1.msra.mxu0 0.0
    %258 = vmatprep.mubr.f32.mxu0 0.0
    %v259 = vand.u32 %v92, 4294901760
    %260 = vmatmul.mubr.f32.gmra.mrb[0].mxu0 %v259
    %v261 = vpop.f32.mrb[0].mxu0
    %v262 = vadd.f32 %v171, %v261
    %v263 = vpop.f32.mrb[0].mxu0
    %264 = vmatprep.mubr.f32.mxu0 0.0
    %v265 = vand.u32 %v95, 4294901760
    %266 = vmatmul.mubr.f32.gmra.mrb[0].mxu0 %v265
    %v267 = vpop.f32.mrb[0].mxu0
    %v268 = vadd.f32 %v181, %v267
    %v269 = vpop.f32.mrb[0].mxu0
    %270 = vdwg.mxu0
    %271 = vmatprep.subr.mxu0 0.0
    %v272 = vand.u32 %v56, 4294901760
    %v273 = vsub.f32 %v56, %v272
    %274 = vmatpush1.msra.mxu0 %v273
    %275 = vmatprep.subr.mxu0 0.0
    %v276 = vand.u32 %v57, 4294901760
    %v277 = vsub.f32 %v57, %v276
    %278 = vmatpush1.msra.mxu0 %v277
    %279 = vmatprep.subr.mxu0 0.0
    %280 = vmatpush1.msra.mxu0 0.0
    %281 = vmatprep.subr.mxu0 0.0
    %282 = vmatpush1.msra.mxu0 0.0
    %283 = vmatprep.subr.mxu0 0.0
    %284 = vmatpush1.msra.mxu0 0.0
    %285 = vmatprep.subr.mxu0 0.0
    %286 = vmatpush1.msra.mxu0 0.0
    %287 = vmatprep.subr.mxu0 0.0
    %288 = vmatpush1.msra.mxu0 0.0
    %289 = vmatprep.subr.mxu0 0.0
    %290 = vmatpush1.msra.mxu0 0.0
    %291 = vmatprep.subr.mxu0 0.0
    %292 = vmatpush1.msra.mxu0 0.0
    %293 = vmatprep.subr.mxu0 0.0
    %294 = vmatpush1.msra.mxu0 0.0
    %295 = vmatprep.subr.mxu0 0.0
    %296 = vmatpush1.msra.mxu0 0.0
    %297 = vmatprep.subr.mxu0 0.0
    %298 = vmatpush1.msra.mxu0 0.0
    %299 = vmatprep.subr.mxu0 0.0
    %300 = vmatpush1.msra.mxu0 0.0
    %301 = vmatprep.subr.mxu0 0.0
    %302 = vmatpush1.msra.mxu0 0.0
    %303 = vmatprep.subr.mxu0 0.0
    %304 = vmatpush1.msra.mxu0 0.0
    %305 = vmatprep.subr.mxu0 0.0
    %306 = vmatpush1.msra.mxu0 0.0
    %307 = vmatprep.subr.mxu0 0.0
    %308 = vmatpush1.msra.mxu0 0.0
    %309 = vmatprep.subr.mxu0 0.0
    %310 = vmatpush1.msra.mxu0 0.0
    %311 = vmatprep.subr.mxu0 0.0
    %312 = vmatpush1.msra.mxu0 0.0
    %313 = vmatprep.subr.mxu0 0.0
    %314 = vmatpush1.msra.mxu0 0.0
    %315 = vmatprep.subr.mxu0 0.0
    %316 = vmatpush1.msra.mxu0 0.0
    %317 = vmatprep.subr.mxu0 0.0
    %318 = vmatpush1.msra.mxu0 0.0
    %319 = vmatprep.subr.mxu0 0.0
    %320 = vmatpush1.msra.mxu0 0.0
    %321 = vmatprep.subr.mxu0 0.0
    %322 = vmatpush1.msra.mxu0 0.0
    %323 = vmatprep.subr.mxu0 0.0
    %324 = vmatpush1.msra.mxu0 0.0
    %325 = vmatprep.subr.mxu0 0.0
    %326 = vmatpush1.msra.mxu0 0.0
    %327 = vmatprep.subr.mxu0 0.0
    %328 = vmatpush1.msra.mxu0 0.0
    %329 = vmatprep.subr.mxu0 0.0
    %330 = vmatpush1.msra.mxu0 0.0
    %331 = vmatprep.subr.mxu0 0.0
    %332 = vmatpush1.msra.mxu0 0.0
    %333 = vmatprep.subr.mxu0 0.0
    %334 = vmatpush1.msra.mxu0 0.0
    %335 = vmatprep.subr.mxu0 0.0
    %336 = vmatpush1.msra.mxu0 0.0
    %337 = vmatprep.subr.mxu0 0.0
    %338 = vmatpush1.msra.mxu0 0.0
    %339 = vmatprep.mubr.f32.mxu0 0.0
    %v340 = vand.u32 %v92, 4294901760
    %v341 = vsub.f32 %v92, %v340
    %342 = vmatmul.mubr.f32.gmra.mrb[0].mxu0 %v341
    %v343 = vpop.f32.mrb[0].mxu0
    %v344 = vadd.f32 %v262, %v343
    %v345 = vpop.f32.mrb[0].mxu0
    %346 = vmatprep.mubr.f32.mxu0 0.0
    %v347 = vand.u32 %v95, 4294901760
    %v348 = vsub.f32 %v95, %v347
    %349 = vmatmul.mubr.f32.gmra.mrb[0].mxu0 %v348
    %v350 = vpop.f32.mrb[0].mxu0
    %v351 = vadd.f32 %v268, %v350
    %v352 = vpop.f32.mrb[0].mxu0
    %353 = vdwg.mxu0
    %354 = vmatprep.subr.mxu0 0.0
    %v355 = vand.u32 %v56, 4294901760
    %356 = vmatpush1.msra.mxu0 %v355
    %357 = vmatprep.subr.mxu0 0.0
    %v358 = vand.u32 %v57, 4294901760
    %359 = vmatpush1.msra.mxu0 %v358
    %360 = vmatprep.subr.mxu0 0.0
    %361 = vmatpush1.msra.mxu0 0.0
    %362 = vmatprep.subr.mxu0 0.0
    %363 = vmatpush1.msra.mxu0 0.0
    %364 = vmatprep.subr.mxu0 0.0
    %365 = vmatpush1.msra.mxu0 0.0
    %366 = vmatprep.subr.mxu0 0.0
    %367 = vmatpush1.msra.mxu0 0.0
    %368 = vmatprep.subr.mxu0 0.0
    %369 = vmatpush1.msra.mxu0 0.0
    %370 = vmatprep.subr.mxu0 0.0
    %371 = vmatpush1.msra.mxu0 0.0
    %372 = vmatprep.subr.mxu0 0.0
    %373 = vmatpush1.msra.mxu0 0.0
    %374 = vmatprep.subr.mxu0 0.0
    %375 = vmatpush1.msra.mxu0 0.0
    %376 = vmatprep.subr.mxu0 0.0
    %377 = vmatpush1.msra.mxu0 0.0
    %378 = vmatprep.subr.mxu0 0.0
    %379 = vmatpush1.msra.mxu0 0.0
    %380 = vmatprep.subr.mxu0 0.0
    %381 = vmatpush1.msra.mxu0 0.0
    %382 = vmatprep.subr.mxu0 0.0
    %383 = vmatpush1.msra.mxu0 0.0
    %384 = vmatprep.subr.mxu0 0.0
    %385 = vmatpush1.msra.mxu0 0.0
    %386 = vmatprep.subr.mxu0 0.0
    %387 = vmatpush1.msra.mxu0 0.0
    %388 = vmatprep.subr.mxu0 0.0
    %389 = vmatpush1.msra.mxu0 0.0
    %390 = vmatprep.subr.mxu0 0.0
    %391 = vmatpush1.msra.mxu0 0.0
    %392 = vmatprep.subr.mxu0 0.0
    %393 = vmatpush1.msra.mxu0 0.0
    %394 = vmatprep.subr.mxu0 0.0
    %395 = vmatpush1.msra.mxu0 0.0
    %396 = vmatprep.subr.mxu0 0.0
    %397 = vmatpush1.msra.mxu0 0.0
    %398 = vmatprep.subr.mxu0 0.0
    %399 = vmatpush1.msra.mxu0 0.0
    %400 = vmatprep.subr.mxu0 0.0
    %401 = vmatpush1.msra.mxu0 0.0
    %402 = vmatprep.subr.mxu0 0.0
    %403 = vmatpush1.msra.mxu0 0.0
    %404 = vmatprep.subr.mxu0 0.0
    %405 = vmatpush1.msra.mxu0 0.0
    %406 = vmatprep.subr.mxu0 0.0
    %407 = vmatpush1.msra.mxu0 0.0
    %408 = vmatprep.subr.mxu0 0.0
    %409 = vmatpush1.msra.mxu0 0.0
    %410 = vmatprep.subr.mxu0 0.0
    %411 = vmatpush1.msra.mxu0 0.0
    %412 = vmatprep.subr.mxu0 0.0
    %413 = vmatpush1.msra.mxu0 0.0
    %414 = vmatprep.subr.mxu0 0.0
    %415 = vmatpush1.msra.mxu0 0.0
    %416 = vmatprep.subr.mxu0 0.0
    %417 = vmatpush1.msra.mxu0 0.0
    %418 = vmatprep.subr.mxu0 0.0
    %419 = vmatpush1.msra.mxu0 0.0
    %420 = vmatprep.mubr.f32.mxu0 0.0
    %v421 = vand.u32 %v92, 4294901760
    %v422 = vsub.f32 %v92, %v421
    %v423 = vand.u32 %v422, 4294901760
    %424 = vmatmul.mubr.f32.gmra.mrb[0].mxu0 %v423
    %v425 = vpop.f32.mrb[0].mxu0
    %v426 = vadd.f32 %v344, %v425
    %v427 = vpop.f32.mrb[0].mxu0
    %428 = vmatprep.mubr.f32.mxu0 0.0
    %v429 = vand.u32 %v95, 4294901760
    %v430 = vsub.f32 %v95, %v429
    %v431 = vand.u32 %v430, 4294901760
    %432 = vmatmul.mubr.f32.gmra.mrb[0].mxu0 %v431
    %v433 = vpop.f32.mrb[0].mxu0
    %v434 = vadd.f32 %v351, %v433
    %v435 = vpop.f32.mrb[0].mxu0
    %436 = vdwg.mxu0
    %437 = vmatprep.subr.mxu0 0.0
    %v438 = vand.u32 %v56, 4294901760
    %v439 = vsub.f32 %v56, %v438
    %v440 = vand.u32 %v439, 4294901760
    %441 = vmatpush1.msra.mxu0 %v440
    %442 = vmatprep.subr.mxu0 0.0
    %v443 = vand.u32 %v57, 4294901760
    %v444 = vsub.f32 %v57, %v443
    %v445 = vand.u32 %v444, 4294901760
    %446 = vmatpush1.msra.mxu0 %v445
    %447 = vmatprep.subr.mxu0 0.0
    %448 = vmatpush1.msra.mxu0 0.0
    %449 = vmatprep.subr.mxu0 0.0
    %450 = vmatpush1.msra.mxu0 0.0
    %451 = vmatprep.subr.mxu0 0.0
    %452 = vmatpush1.msra.mxu0 0.0
    %453 = vmatprep.subr.mxu0 0.0
    %454 = vmatpush1.msra.mxu0 0.0
    %455 = vmatprep.subr.mxu0 0.0
    %456 = vmatpush1.msra.mxu0 0.0
    %457 = vmatprep.subr.mxu0 0.0
    %458 = vmatpush1.msra.mxu0 0.0
    %459 = vmatprep.subr.mxu0 0.0
    %460 = vmatpush1.msra.mxu0 0.0
    %461 = vmatprep.subr.mxu0 0.0
    %462 = vmatpush1.msra.mxu0 0.0
    %463 = vmatprep.subr.mxu0 0.0
    %464 = vmatpush1.msra.mxu0 0.0
    %465 = vmatprep.subr.mxu0 0.0
    %466 = vmatpush1.msra.mxu0 0.0
    %467 = vmatprep.subr.mxu0 0.0
    %468 = vmatpush1.msra.mxu0 0.0
    %469 = vmatprep.subr.mxu0 0.0
    %470 = vmatpush1.msra.mxu0 0.0
    %471 = vmatprep.subr.mxu0 0.0
    %472 = vmatpush1.msra.mxu0 0.0
    %473 = vmatprep.subr.mxu0 0.0
    %474 = vmatpush1.msra.mxu0 0.0
    %475 = vmatprep.subr.mxu0 0.0
    %476 = vmatpush1.msra.mxu0 0.0
    %477 = vmatprep.subr.mxu0 0.0
    %478 = vmatpush1.msra.mxu0 0.0
    %479 = vmatprep.subr.mxu0 0.0
    %480 = vmatpush1.msra.mxu0 0.0
    %481 = vmatprep.subr.mxu0 0.0
    %482 = vmatpush1.msra.mxu0 0.0
    %483 = vmatprep.subr.mxu0 0.0
    %484 = vmatpush1.msra.mxu0 0.0
    %485 = vmatprep.subr.mxu0 0.0
    %486 = vmatpush1.msra.mxu0 0.0
    %487 = vmatprep.subr.mxu0 0.0
    %488 = vmatpush1.msra.mxu0 0.0
    %489 = vmatprep.subr.mxu0 0.0
    %490 = vmatpush1.msra.mxu0 0.0
    %491 = vmatprep.subr.mxu0 0.0
    %492 = vmatpush1.msra.mxu0 0.0
    %493 = vmatprep.subr.mxu0 0.0
    %494 = vmatpush1.msra.mxu0 0.0
    %495 = vmatprep.subr.mxu0 0.0
    %496 = vmatpush1.msra.mxu0 0.0
    %497 = vmatprep.subr.mxu0 0.0
    %498 = vmatpush1.msra.mxu0 0.0
    %499 = vmatprep.subr.mxu0 0.0
    %500 = vmatpush1.msra.mxu0 0.0
    %501 = vmatprep.subr.mxu0 0.0
    %502 = vmatpush1.msra.mxu0 0.0
    %503 = vmatprep.subr.mxu0 0.0
    %504 = vmatpush1.msra.mxu0 0.0
    %505 = vmatprep.subr.mxu0 0.0
    %506 = vmatpush1.msra.mxu0 0.0
    %507 = vmatprep.mubr.f32.mxu0 0.0
    %v508 = vand.u32 %v92, 4294901760
    %509 = vmatmul.mubr.f32.gmra.mrb[0].mxu0 %v508
    %v510 = vpop.f32.mrb[0].mxu0
    %v511 = vadd.f32 %v426, %v510
    %v512 = vpop.f32.mrb[0].mxu0
    %513 = vmatprep.mubr.f32.mxu0 0.0
    %v514 = vand.u32 %v95, 4294901760
    %515 = vmatmul.mubr.f32.gmra.mrb[0].mxu0 %v514
    %v516 = vpop.f32.mrb[0].mxu0
    %v517 = vadd.f32 %v434, %v516
    %v518 = vpop.f32.mrb[0].mxu0
    %519 = vdwg.mxu0
    %520 = vmatprep.subr.mxu0 0.0
    %v521 = vand.u32 %v56, 4294901760
    %522 = vmatpush1.msra.mxu0 %v521
    %523 = vmatprep.subr.mxu0 0.0
    %v524 = vand.u32 %v57, 4294901760
    %525 = vmatpush1.msra.mxu0 %v524
    %526 = vmatprep.subr.mxu0 0.0
    %527 = vmatpush1.msra.mxu0 0.0
    %528 = vmatprep.subr.mxu0 0.0
    %529 = vmatpush1.msra.mxu0 0.0
    %530 = vmatprep.subr.mxu0 0.0
    %531 = vmatpush1.msra.mxu0 0.0
    %532 = vmatprep.subr.mxu0 0.0
    %533 = vmatpush1.msra.mxu0 0.0
    %534 = vmatprep.subr.mxu0 0.0
    %535 = vmatpush1.msra.mxu0 0.0
    %536 = vmatprep.subr.mxu0 0.0
    %537 = vmatpush1.msra.mxu0 0.0
    %538 = vmatprep.subr.mxu0 0.0
    %539 = vmatpush1.msra.mxu0 0.0
    %540 = vmatprep.subr.mxu0 0.0
    %541 = vmatpush1.msra.mxu0 0.0
    %542 = vmatprep.subr.mxu0 0.0
    %543 = vmatpush1.msra.mxu0 0.0
    %544 = vmatprep.subr.mxu0 0.0
    %545 = vmatpush1.msra.mxu0 0.0
    %546 = vmatprep.subr.mxu0 0.0
    %547 = vmatpush1.msra.mxu0 0.0
    %548 = vmatprep.subr.mxu0 0.0
    %549 = vmatpush1.msra.mxu0 0.0
    %550 = vmatprep.subr.mxu0 0.0
    %551 = vmatpush1.msra.mxu0 0.0
    %552 = vmatprep.subr.mxu0 0.0
    %553 = vmatpush1.msra.mxu0 0.0
    %554 = vmatprep.subr.mxu0 0.0
    %555 = vmatpush1.msra.mxu0 0.0
    %556 = vmatprep.subr.mxu0 0.0
    %557 = vmatpush1.msra.mxu0 0.0
    %558 = vmatprep.subr.mxu0 0.0
    %559 = vmatpush1.msra.mxu0 0.0
    %560 = vmatprep.subr.mxu0 0.0
    %561 = vmatpush1.msra.mxu0 0.0
    %562 = vmatprep.subr.mxu0 0.0
    %563 = vmatpush1.msra.mxu0 0.0
    %564 = vmatprep.subr.mxu0 0.0
    %565 = vmatpush1.msra.mxu0 0.0
    %566 = vmatprep.subr.mxu0 0.0
    %567 = vmatpush1.msra.mxu0 0.0
    %568 = vmatprep.subr.mxu0 0.0
    %569 = vmatpush1.msra.mxu0 0.0
    %570 = vmatprep.subr.mxu0 0.0
    %571 = vmatpush1.msra.mxu0 0.0
    %572 = vmatprep.subr.mxu0 0.0
    %573 = vmatpush1.msra.mxu0 0.0
    %574 = vmatprep.subr.mxu0 0.0
    %575 = vmatpush1.msra.mxu0 0.0
    %576 = vmatprep.subr.mxu0 0.0
    %577 = vmatpush1.msra.mxu0 0.0
    %578 = vmatprep.subr.mxu0 0.0
    %579 = vmatpush1.msra.mxu0 0.0
    %580 = vmatprep.subr.mxu0 0.0
    %581 = vmatpush1.msra.mxu0 0.0
    %582 = vmatprep.subr.mxu0 0.0
    %583 = vmatpush1.msra.mxu0 0.0
    %584 = vmatprep.subr.mxu0 0.0
    %585 = vmatpush1.msra.mxu0 0.0
    %586 = vmatprep.mubr.f32.mxu0 0.0
    %v587 = vand.u32 %v92, 4294901760
    %588 = vmatmul.mubr.f32.gmra.mrb[0].mxu0 %v587
    %v589 = vpop.f32.mrb[0].mxu0
    %v590 = vadd.f32 %v511, %v589
    %v591 = vpop.f32.mrb[0].mxu0
    %592 = vmatprep.mubr.f32.mxu0 0.0
    %v593 = vand.u32 %v95, 4294901760
    %594 = vmatmul.mubr.f32.gmra.mrb[0].mxu0 %v593
    %v595 = vpop.f32.mrb[0].mxu0
    %v596 = vadd.f32 %v517, %v595
    %v597 = vpop.f32.mrb[0].mxu0
    %598 = vdwg.mxu0
    %p599 = scmp.eq.s32.totalorder 0, 0
    // Predicated region
    $region18: #{tpu_custom_call.1} parent=1 // pred_check
      %p600 = pneg %p599
    $region19: #{tpu_custom_call.1} parent=1 // pred_check_branch
      %602 = sbr.rel (%p600) target = $region21
    $region20: #{tpu_custom_call.1} parent=1 // pred_region
      %603 = vst [vmem:[#allocation7] sm:$0xff] %v590
      %604 = vst [vmem:[#allocation7 + $0x8] sm:$0xff] %v596
    $region21: #{tpu_custom_call.1} parent=1 // pred_fallthru
      _
    %p605 = scmp.gt.s32.totalorder 0, 0
    // Predicated region
    $region22: #{tpu_custom_call.1} parent=1 // pred_check
      %p606 = pneg %p605
    $region23: #{tpu_custom_call.1} parent=1 // pred_check_branch
      %608 = sbr.rel (%p606) target = $region25
    $region24: #{tpu_custom_call.1} parent=1 // pred_region
      %v609 = vld [vmem:[#allocation7] sm:$0xff]
      %v610 = vld [vmem:[#allocation7 + $0x8] sm:$0xff]
      %v611 = vadd.f32 %v609, %v590
      %v612 = vadd.f32 %v610, %v596
      %613 = vst [vmem:[#allocation7] sm:$0xff] %v611
      %614 = vst [vmem:[#allocation7 + $0x8] sm:$0xff] %v612
    $region25: #{tpu_custom_call.1} parent=1 // pred_fallthru
      _
    // Predicated region
    $region26: #{tpu_custom_call.1} parent=1 // pred_check
      _
    $region27: #{tpu_custom_call.1} parent=1 // pred_check_branch
      %616 = sbr.rel (0) target = $region29
    $region28: #{tpu_custom_call.1} parent=1 // pred_region
      %s618 = ssub.s32 256, 256
      %619 = vsyncadd [#allocation4], %s618
      %s620 = sshll.u32 [#allocation7], 4
      %s621 = int_to_ptr.vmem [resolvable:$true] %s620
      %626 = dma.vmem_to_hbm [thread:$0]  %s621, 256, %s2, [#allocation4], 128, 128, 8
    $region29: #{tpu_custom_call.1} parent=1 // pred_fallthru
      _
    // Predicated region
    $region30: #{tpu_custom_call.1} parent=1 // pred_check
      _
    $region31: #{tpu_custom_call.1} parent=1 // pred_check_branch
      %628 = sbr.rel (0) target = $region33
    $region32: #{tpu_custom_call.1} parent=1 // pred_region
      %629 = dma.done [#allocation4], 256
    $region33: #{tpu_custom_call.1} parent=1 // pred_fallthru
      _
    %630 = vsyncpa [#allocation3], 1
    %631 = vsyncpa [#allocation6], 1
    %632 = vsyncpa [#allocation4], 1

</llo_original>
